<compile_context>
chip_gen: v5e
topology: v5e:2x2
jax: 0.10.0
libtpu: 0.0.40
codegen_flags: <defaults>
</compile_context>

<pallas_src>
import functools

import jax
import jax.numpy as jnp
import numpy as np
from jax.experimental import pallas as pl
from jax.experimental.pallas import tpu as pltpu

_MIB = 1024 * 1024


def _round_up(x, m):
    return ((x + m - 1) // m) * m


def _pick_tile(n, target, mult):
    """Largest multiple of `mult` dividing n and <= target; fall back to n (full dim)."""
    if n % mult != 0:
        return n
    t = (min(target, n) // mult) * mult
    while t >= mult:
        if n % t == 0:
            return t
        t -= mult
    return n


def _tpu_generation():
    """Return 5/6/7 for v5*/v6*/v7x TPUs, None otherwise (CPU, v4, unknown)."""
    try:
        d = jax.devices()[0]
        if d.platform != "tpu":
            return None
        kind = d.device_kind.lower()
    except Exception:
        return None
    if "v5" in kind:
        return 5
    if "v6" in kind:
        return 6
    if "v7" in kind or "7x" in kind:
        return 7
    return None


def _s2v_kernel(nf_ref, adjT_ref, norm_ref, nm_ref,
                w0_ref, wr_ref, w2a_ref, w2b_ref,
                out_ref, emb_acc, *, edge_dtype, approx_recip):
    # Blocks per grid step (b, it, jt):
    #   nf_ref   (1, tile_j, Fin)     node features of the neighbour chunk
    #   adjT_ref (1, tile_j, tile_i)  adj transposed: adjT[j, i] = adj[i, j]
    #   norm_ref (1, tile_i, 1)
    #   nm_ref   (1, 1) SMEM          1 / norm.max()
    #   w0/wr    (1, Fp) / (Fin, Fp)  W1.T split: adj-column / node-feature rows (zero-padded)
    #   w2a/w2b  (Fp, Fo) / (1, Fo)   W2.T split: embedded rows / norm row (zero-padded)
    #   out_ref  (1, tile_i, Fo)
    #   emb_acc  (tile_i, Fp) f32 VMEM scratch, persists across the j (arbitrary) axis
    jt = pl.program_id(2)

    @pl.when(jt == 0)
    def _():
        emb_acc[...] = jnp.zeros_like(emb_acc)

    nf_j = nf_ref[0]                                    # (tile_j, Fin) f32
    adjT = adjT_ref[0]                                  # (tile_j, tile_i) f32

    # Neighbour projection on the MXU (tiny K, negligible): P[j,f] = nf[j] @ W1[:,1:].T
    P = jnp.dot(nf_j, wr_ref[...], preferred_element_type=jnp.float32)    # (tile_j, Fp)

    adj_e = adjT.astype(edge_dtype)                     # (tile_j, tile_i) — broadcast ONCE below
    # Masking folded into an additive pre-relu bias (2-D, cheap); replaces cmp+select.
    bias = jnp.where(adjT == 0.0, -1e30, 0.0).astype(edge_dtype)          # (tile_j, tile_i)
    w0_e = w0_ref[...].astype(edge_dtype)               # (1, Fp)
    P_e = P.astype(edge_dtype)                          # (tile_j, Fp)

    # T[j,i,f] = adj[i,j]*w0[f] + P[j,f] + bias[j,i]; relu; reduce over LEADING j axis.
    T = adj_e[:, :, None] * w0_e[None, :, :] + P_e[:, None, :] + bias[:, :, None]
    R = jnp.maximum(T, 0)                               # masked entries -> exactly 0
    emb_acc[...] += jnp.sum(R, axis=0).astype(jnp.float32)               # (tile_i, Fp)

    @pl.when(jt == pl.num_programs(2) - 1)
    def _():
        norm = norm_ref[0]                                               # (tile_i, 1)
        inv_norm = pl.reciprocal(norm, approx=approx_recip)
        embedded = emb_acc[...] * inv_norm                               # (tile_i, Fp)
        nn = norm * nm_ref[0, 0]                                         # norm / norm.max()
        y = (jnp.dot(embedded, w2a_ref[...], preferred_element_type=jnp.float32)
             + nn * w2b_ref[...])                                        # (tile_i, Fo)
        out_ref[0] = jnp.maximum(y, 0.0).astype(out_ref.dtype)


def edge_and_node_embedding(node_features, adj, norm, w1, w2,
                            *, edge_block_dtype=None,
                            tile_i_target=None, tile_j_target=None,
                            vmem_limit_bytes=None,
                            approx_reciprocal=False):
    """w1: (n_features-1, n_obs_in+1), w2: (n_features, n_features) — torch nn.Linear layout.

    edge_block_dtype / tile targets / vmem limit default to chip-generation-aware values
    (bf16 edge blocks on v6e/v7x, f32 on v5e; 96 MiB VMEM cap on v5/v6, 56 MiB on v7x).
    Pass edge_block_dtype=jnp.float32 for a bit-faithful f32 path on any chip.
    """
    node_features = jnp.asarray(node_features, jnp.float32)
    adj = jnp.asarray(adj, jnp.float32)
    norm = jnp.asarray(norm, jnp.float32)
    B, N, Fin = node_features.shape
    F = int(w2.shape[0])

    # ---- chip-generation-aware defaults --------------------------------------------
    gen = _tpu_generation()
    if edge_block_dtype is None:
        edge_block_dtype = jnp.bfloat16 if gen in (6, 7) else jnp.float32
    edge_dtype = jnp.dtype(edge_block_dtype)
    is_bf16 = edge_dtype == jnp.dtype(jnp.bfloat16)
    if vmem_limit_bytes is None:
        vmem_limit_bytes = {5: 96, 6: 96, 7: 56}.get(gen, 32) * _MIB
    if tile_i_target is None:
        tile_i_target = 256 if gen in (5, 6, 7) else 128
    if tile_j_target is None:
        if gen in (5, 6, 7):
            tile_j_target = 128 if is_bf16 else 64
        else:
            tile_j_target = 32
    # Give both v7x TensorCores parallel grid work for small batches.
    if B == 1:
        tile_i_target = min(tile_i_target, 128)

    # Global norm.max() inverted in the wrapper (glue reduction, before any padding).
    inv_nm = (1.0 / jnp.max(norm)).reshape(1, 1).astype(jnp.float32)

    # ---- pad N so tiles always satisfy the (8,128) block constraints ----------------
    Np8 = _round_up(N, 8)
    if Np8 <= tile_i_target:
        Np = Np8
        tile_i = Np                       # full-dim block: lane constraint satisfied
    else:
        Np = _round_up(N, 128)
        tile_i = _pick_tile(Np, tile_i_target, 128)
    tile_j = _pick_tile(Np, tile_j_target, 8)
    if Np != N:
        pad = Np - N
        node_features = jnp.pad(node_features, ((0, 0), (0, pad), (0, 0)))
        adj = jnp.pad(adj, ((0, 0), (0, pad), (0, pad)))                 # zeros: masked out
        norm = jnp.pad(norm, ((0, 0), (0, pad), (0, 0)), constant_values=1.0)
    n_it = Np // tile_i
    n_jt = Np // tile_j

    # Lane-dense padded feature dims (multiples of 128); padding columns stay exactly 0.
    Fp = _round_up(max(F - 1, 1), 128)    # edge-embedding width
    Fo = _round_up(F, 128)                # output width

    # Pre-split + pre-pad weights in the wrapper (no in-kernel sublane slices).
    w1t = jnp.asarray(w1, jnp.float32).T                                 # (Fin+1, F-1)
    w2t = jnp.asarray(w2, jnp.float32).T                                 # (F, F)
    w0 = jnp.zeros((1, Fp), jnp.float32).at[:, :F - 1].set(w1t[0:1, :])
    wr = jnp.zeros((Fin, Fp), jnp.float32).at[:, :F - 1].set(w1t[1:, :])
    w2a = jnp.zeros((Fp, Fo), jnp.float32).at[:F - 1, :F].set(w2t[:-1, :])
    w2b = jnp.zeros((1, Fo), jnp.float32).at[:, :F].set(w2t[-1:, :])

    # adj transposed once outside the kernel: adj_t[b, j, i] = adj[b, i, j].
    adj_t = jnp.swapaxes(adj, 1, 2)

    kernel = functools.partial(_s2v_kernel,
                               edge_dtype=edge_dtype,
                               approx_recip=approx_reciprocal)

    out_p = pl.pallas_call(
        kernel,
        out_shape=jax.ShapeDtypeStruct((B, Np, Fo), jnp.float32),
        grid_spec=pltpu.PrefetchScalarGridSpec(
            num_scalar_prefetch=0,
            grid=(B, n_it, n_jt),
            in_specs=[
                pl.BlockSpec((1, tile_j, Fin), lambda b, it, jt: (b, jt, 0)),      # node feats (j)
                pl.BlockSpec((1, tile_j, tile_i), lambda b, it, jt: (b, jt, it)),  # adj^T chunk
                pl.BlockSpec((1, tile_i, 1), lambda b, it, jt: (b, it, 0)),        # norm (i rows)
                pl.BlockSpec(memory_space=pltpu.SMEM),                             # 1/norm.max()
                pl.BlockSpec((1, Fp), lambda b, it, jt: (0, 0)),                   # w0
                pl.BlockSpec((Fin, Fp), lambda b, it, jt: (0, 0)),                 # wr
                pl.BlockSpec((Fp, Fo), lambda b, it, jt: (0, 0)),                  # w2a
                pl.BlockSpec((1, Fo), lambda b, it, jt: (0, 0)),                   # w2b
            ],
            out_specs=pl.BlockSpec((1, tile_i, Fo), lambda b, it, jt: (b, it, 0)),
            scratch_shapes=[pltpu.VMEM((tile_i, Fp), jnp.float32)],
        ),
        compiler_params=pltpu.CompilerParams(
            dimension_semantics=("parallel", "parallel", "arbitrary"),
            vmem_limit_bytes=int(vmem_limit_bytes)),
    )(node_features, adj_t, norm, inv_nm, w0, wr, w2a, w2b)

    return out_p[:, :N, :F]


def reference_forward(node_features, adj, norm, w1, w2):
    # Pure-JAX mirror of the PyTorch forward for verification.
    B, N, Fin = node_features.shape
    rep = jnp.broadcast_to(node_features[:, None, :, :], (B, N, N, Fin))
    ef = jnp.concatenate([adj[..., None], rep], axis=-1)
    ef = ef * (adj[..., None] != 0).astype(jnp.float32)
    ef_u = ef.reshape(B, N * N, Fin + 1)
    emb_u = jax.nn.relu(ef_u @ w1.T)
    emb = emb_u.reshape(B, N, N, -1)
    embedded = emb.sum(axis=2) / norm
    cat = jnp.concatenate([embedded, norm / jnp.max(norm)], axis=-1)
    return jax.nn.relu(cat @ w2.T)


if __name__ == "__main__":
    n_obs_in, n_features = 4, 32
    master_key = jax.random.PRNGKey(0)

    def make_inputs(key, B, N):
        k1, k2, k3, k4, k5 = jax.random.split(key, 5)
        nf = jax.random.normal(k1, (B, N, n_obs_in), dtype=jnp.float32)
        edge_mask = (jax.random.uniform(k2, (B, N, N)) < 0.5).astype(jnp.float32)
        adj = edge_mask * jax.random.uniform(k3, (B, N, N), minval=0.1, maxval=1.0)
        norm = jnp.maximum(jnp.sum((adj != 0).astype(jnp.float32), axis=-1,
                                   keepdims=True), 1.0)
        w1 = (jax.random.normal(k4, (n_features - 1, n_obs_in + 1), dtype=jnp.float32)
              * (1.0 / np.sqrt(n_obs_in + 1)))
        w2 = (jax.random.normal(k5, (n_features, n_features), dtype=jnp.float32)
              * (1.0 / np.sqrt(n_features)))
        return nf, adj, norm, w1, w2

    # 1) Strict-f32 path on two shapes (the second exercises the N-padding path).
    for sub_key, (B, N) in zip(jax.random.split(master_key, 2), [(2, 8), (1, 12)]):
        nf, adj, norm, w1, w2 = make_inputs(sub_key, B, N)
        ref = reference_forward(nf, adj, norm, w1, w2)
        out = edge_and_node_embedding(nf, adj, norm, w1, w2,
                                      edge_block_dtype=jnp.float32)
        out = jax.block_until_ready(out)
        np.testing.assert_allclose(np.asarray(out), np.asarray(ref),
                                   rtol=1e-5, atol=1e-5)

    # 2) Chip-tuned default path (bf16 edge blocks on v6e/v7x) with looser tolerance.
    nf, adj, norm, w1, w2 = make_inputs(jax.random.split(master_key, 2)[0], 2, 8)
    ref = reference_forward(nf, adj, norm, w1, w2)
    out = edge_and_node_embedding(nf, adj, norm, w1, w2)
    out = jax.block_until_ready(out)
    tol = 1e-1 if _tpu_generation() in (6, 7) else 1e-5
    np.testing.assert_allclose(np.asarray(out), np.asarray(ref), rtol=tol, atol=tol)

    print("KERNEL_OK")
</pallas_src>

<mosaic_0001>
module attributes {stable_mosaic.version = 11 : i64} {
  func.func @_s2v_kernel(%arg0: i32, %arg1: i32, %arg2: i32, %arg3: memref<1x8x4xf32, #tpu.memory_space<vmem>>, %arg4: memref<1x8x8xf32, #tpu.memory_space<vmem>>, %arg5: memref<1x8x1xf32, #tpu.memory_space<vmem>>, %arg6: memref<1x1xf32, #tpu.memory_space<smem>>, %arg7: memref<1x128xf32, #tpu.memory_space<vmem>>, %arg8: memref<4x128xf32, #tpu.memory_space<vmem>>, %arg9: memref<128x128xf32, #tpu.memory_space<vmem>>, %arg10: memref<1x128xf32, #tpu.memory_space<vmem>>, %arg11: memref<1x8x128xf32, #tpu.memory_space<vmem>>, %arg12: memref<8x128xf32, #tpu.memory_space<vmem>>) attributes {dimension_semantics = [#tpu.dimension_semantics<parallel>, #tpu.dimension_semantics<parallel>, #tpu.dimension_semantics<arbitrary>], iteration_bounds = array<i64: 2, 1, 1>, scalar_prefetch = 0 : i64, scratch_operands = 1 : i64, tpu.core_type = #tpu.core_type<tc>, window_params = [{transform_indices = @transform_0, window_bounds = array<i64: 1, 8, 4>}, {transform_indices = @transform_1, window_bounds = array<i64: 1, 8, 8>}, {transform_indices = @transform_2, window_bounds = array<i64: 1, 8, 1>}, {transform_indices = @transform_3, window_bounds = array<i64: 1, 1>}, {pipeline_mode = #tpu.pipeline_mode<synchronous>, transform_indices = @transform_4, window_bounds = array<i64: 1, 128>}, {pipeline_mode = #tpu.pipeline_mode<synchronous>, transform_indices = @transform_5, window_bounds = array<i64: 4, 128>}, {pipeline_mode = #tpu.pipeline_mode<synchronous>, transform_indices = @transform_6, window_bounds = array<i64: 128, 128>}, {pipeline_mode = #tpu.pipeline_mode<synchronous>, transform_indices = @transform_7, window_bounds = array<i64: 1, 128>}, {transform_indices = @transform_8, window_bounds = array<i64: 1, 8, 128>}]} {
    %c0_i32 = arith.constant 0 : i32
    %0 = arith.cmpi eq, %arg2, %c0_i32 : i32
    %1 = arith.extui %0 : i1 to i32
    %c0_i32_0 = arith.constant 0 : i32
    %2 = arith.cmpi ne, %1, %c0_i32_0 : i32
    scf.if %2 {
      %cst_21 = arith.constant 0.000000e+00 : f32
      %35 = vector.broadcast %cst_21 : f32 to vector<8x128xf32>
      %c0_22 = arith.constant 0 : index
      %c0_23 = arith.constant 0 : index
      %36 = vector.load %arg12[%c0_22, %c0_23] : memref<8x128xf32, #tpu.memory_space<vmem>>, vector<8x128xf32>
      tpu.vector_store %arg12[%c0_22, %c0_23], %35 {strides = array<i32>} : memref<8x128xf32, #tpu.memory_space<vmem>>, vector<8x128xf32>,
    } else {
    }
    %c0 = arith.constant 0 : index
    %c0_1 = arith.constant 0 : index
    %c0_2 = arith.constant 0 : index
    %3 = vector.load %arg3[%c0, %c0_1, %c0_2] : memref<1x8x4xf32, #tpu.memory_space<vmem>>, vector<1x8x4xf32>
    %4 = vector.shape_cast %3 : vector<1x8x4xf32> to vector<8x4xf32>
    %c0_3 = arith.constant 0 : index
    %c0_4 = arith.constant 0 : index
    %c0_5 = arith.constant 0 : index
    %5 = vector.load %arg4[%c0_3, %c0_4, %c0_5] : memref<1x8x8xf32, #tpu.memory_space<vmem>>, vector<1x8x8xf32>
    %6 = vector.shape_cast %5 : vector<1x8x8xf32> to vector<8x8xf32>
    %c0_6 = arith.constant 0 : index
    %c0_7 = arith.constant 0 : index
    %7 = vector.load %arg8[%c0_6, %c0_7] : memref<4x128xf32, #tpu.memory_space<vmem>>, vector<4x128xf32>
    %cst = arith.constant dense<0.000000e+00> : vector<8x128xf32>
    %8 = tpu.matmul %4, %7, %cst {dimension_numbers = #tpu.dot_dimension_numbers<[1], [0], [0], [1], [0, 0, 1, 1], [], []>} : vector<8x4xf32>, vector<4x128xf32>, vector<8x128xf32> -> vector<8x128xf32>
    %cst_8 = arith.constant 0.000000e+00 : f32
    %9 = vector.broadcast %cst_8 : f32 to vector<8x8xf32>
    %10 = arith.cmpf oeq, %6, %9 : vector<8x8xf32>
    %cst_9 = arith.constant -1.000000e+30 : f32
    %cst_10 = arith.constant 0.000000e+00 : f32
    %11 = vector.broadcast %cst_9 : f32 to vector<8x8xf32>
    %12 = vector.broadcast %cst_10 : f32 to vector<8x8xf32>
    %13 = arith.select %10, %11, %12 : vector<8x8xi1>, vector<8x8xf32>
    %c0_11 = arith.constant 0 : index
    %c0_12 = arith.constant 0 : index
    %14 = vector.load %arg7[%c0_11, %c0_12] : memref<1x128xf32, #tpu.memory_space<vmem>>, vector<1x128xf32>
    %15 = vector.shape_cast %6 : vector<8x8xf32> to vector<8x8x1xf32>
    %16 = vector.shape_cast %14 : vector<1x128xf32> to vector<1x1x128xf32>
    %17 = vector.broadcast %15 : vector<8x8x1xf32> to vector<8x8x128xf32>
    %18 = vector.broadcast %16 : vector<1x1x128xf32> to vector<8x8x128xf32>
    %19 = arith.mulf %17, %18 : vector<8x8x128xf32>
    %20 = vector.shape_cast %8 : vector<8x128xf32> to vector<8x1x128xf32>
    %21 = vector.broadcast %20 : vector<8x1x128xf32> to vector<8x8x128xf32>
    %22 = arith.addf %19, %21 : vector<8x8x128xf32>
    %23 = vector.shape_cast %13 : vector<8x8xf32> to vector<8x8x1xf32>
    %24 = vector.broadcast %23 : vector<8x8x1xf32> to vector<8x8x128xf32>
    %25 = arith.addf %22, %24 : vector<8x8x128xf32>
    %cst_13 = arith.constant 0.000000e+00 : f32
    %26 = vector.broadcast %cst_13 : f32 to vector<8x8x128xf32>
    %27 = arith.maximumf %25, %26 : vector<8x8x128xf32>
    %c0_14 = arith.constant 0 : index
    %c0_15 = arith.constant 0 : index
    %28 = vector.load %arg12[%c0_14, %c0_15] : memref<8x128xf32, #tpu.memory_space<vmem>>, vector<8x128xf32>
    %cst_16 = arith.constant dense<0.000000e+00> : vector<8x128xf32>
    %29 = vector.multi_reduction <add>, %27, %cst_16 [0] : vector<8x8x128xf32> to vector<8x128xf32>
    %30 = arith.addf %28, %29 : vector<8x128xf32>
    %c0_17 = arith.constant 0 : index
    %c0_18 = arith.constant 0 : index
    %31 = vector.load %arg12[%c0_17, %c0_18] : memref<8x128xf32, #tpu.memory_space<vmem>>, vector<8x128xf32>
    tpu.vector_store %arg12[%c0_17, %c0_18], %30 {strides = array<i32>} : memref<8x128xf32, #tpu.memory_space<vmem>>, vector<8x128xf32>,
    %c0_i32_19 = arith.constant 0 : i32
    %32 = arith.cmpi eq, %arg2, %c0_i32_19 : i32
    %33 = arith.extui %32 : i1 to i32
    %c0_i32_20 = arith.constant 0 : i32
    %34 = arith.cmpi ne, %33, %c0_i32_20 : i32
    scf.if %34 {
      %c0_21 = arith.constant 0 : index
      %c0_22 = arith.constant 0 : index
      %c0_23 = arith.constant 0 : index
      %35 = vector.load %arg5[%c0_21, %c0_22, %c0_23] : memref<1x8x1xf32, #tpu.memory_space<vmem>>, vector<1x8x1xf32>
      %36 = vector.shape_cast %35 : vector<1x8x1xf32> to vector<8x1xf32>
      %37 = tpu.reciprocal %36 : vector<8x1xf32> -> vector<8x1xf32>
      %c0_24 = arith.constant 0 : index
      %c0_25 = arith.constant 0 : index
      %38 = vector.load %arg12[%c0_24, %c0_25] : memref<8x128xf32, #tpu.memory_space<vmem>>, vector<8x128xf32>
      %39 = vector.broadcast %37 : vector<8x1xf32> to vector<8x128xf32>
      %40 = arith.mulf %38, %39 : vector<8x128xf32>
      %c0_26 = arith.constant 0 : index
      %c0_27 = arith.constant 0 : index
      %41 = memref.load %arg6[%c0_26, %c0_27] : memref<1x1xf32, #tpu.memory_space<smem>>
      %42 = vector.broadcast %41 : f32 to vector<8x1xf32>
      %43 = arith.mulf %36, %42 : vector<8x1xf32>
      %c0_28 = arith.constant 0 : index
      %c0_29 = arith.constant 0 : index
      %44 = vector.load %arg9[%c0_28, %c0_29] : memref<128x128xf32, #tpu.memory_space<vmem>>, vector<128x128xf32>
      %cst_30 = arith.constant dense<0.000000e+00> : vector<8x128xf32>
      %45 = tpu.matmul %40, %44, %cst_30 {dimension_numbers = #tpu.dot_dimension_numbers<[1], [0], [0], [1], [0, 0, 1, 1], [], []>} : vector<8x128xf32>, vector<128x128xf32>, vector<8x128xf32> -> vector<8x128xf32>
      %c0_31 = arith.constant 0 : index
      %c0_32 = arith.constant 0 : index
      %46 = vector.load %arg10[%c0_31, %c0_32] : memref<1x128xf32, #tpu.memory_space<vmem>>, vector<1x128xf32>
      %47 = vector.broadcast %43 : vector<8x1xf32> to vector<8x128xf32>
      %48 = vector.broadcast %46 : vector<1x128xf32> to vector<8x128xf32>
      %49 = arith.mulf %47, %48 : vector<8x128xf32>
      %50 = arith.addf %45, %49 : vector<8x128xf32>
      %cst_33 = arith.constant 0.000000e+00 : f32
      %51 = vector.broadcast %cst_33 : f32 to vector<8x128xf32>
      %52 = arith.maximumf %50, %51 : vector<8x128xf32>
      %c0_34 = arith.constant 0 : index
      %c0_35 = arith.constant 0 : index
      %c0_36 = arith.constant 0 : index
      %53 = vector.load %arg11[%c0_34, %c0_35, %c0_36] : memref<1x8x128xf32, #tpu.memory_space<vmem>>, vector<1x8x128xf32>
      %54 = vector.shape_cast %53 : vector<1x8x128xf32> to vector<8x128xf32>
      %55 = vector.shape_cast %52 : vector<8x128xf32> to vector<1x8x128xf32>
      tpu.vector_store %arg11[%c0_34, %c0_35, %c0_36], %55 {strides = array<i32>} : memref<1x8x128xf32, #tpu.memory_space<vmem>>, vector<1x8x128xf32>,
    } else {
    }
    return
  }
  func.func @transform_0(%arg0: i32, %arg1: i32, %arg2: i32) -> (i32, i32, i32) {
    %c0_i32 = arith.constant 0 : i32
    %c0_i32_0 = arith.constant 0 : i32
    return %arg0, %arg2, %c0_i32 : i32, i32, i32
  }
  func.func @transform_1(%arg0: i32, %arg1: i32, %arg2: i32) -> (i32, i32, i32) {
    %c0_i32 = arith.constant 0 : i32
    return %arg0, %arg2, %arg1 : i32, i32, i32
  }
  func.func @transform_2(%arg0: i32, %arg1: i32, %arg2: i32) -> (i32, i32, i32) {
    %c0_i32 = arith.constant 0 : i32
    %c0_i32_0 = arith.constant 0 : i32
    return %arg0, %arg1, %c0_i32 : i32, i32, i32
  }
  func.func @transform_3(%arg0: i32, %arg1: i32, %arg2: i32) -> (i32, i32) {
    %c0_i32 = arith.constant 0 : i32
    %c0_i32_0 = arith.constant 0 : i32
    %c0_i32_1 = arith.constant 0 : i32
    return %c0_i32, %c0_i32_0 : i32, i32
  }
  func.func @transform_4(%arg0: i32, %arg1: i32, %arg2: i32) -> (i32, i32) {
    %c0_i32 = arith.constant 0 : i32
    %c0_i32_0 = arith.constant 0 : i32
    %c0_i32_1 = arith.constant 0 : i32
    return %c0_i32, %c0_i32_0 : i32, i32
  }
  func.func @transform_5(%arg0: i32, %arg1: i32, %arg2: i32) -> (i32, i32) {
    %c0_i32 = arith.constant 0 : i32
    %c0_i32_0 = arith.constant 0 : i32
    %c0_i32_1 = arith.constant 0 : i32
    return %c0_i32, %c0_i32_0 : i32, i32
  }
  func.func @transform_6(%arg0: i32, %arg1: i32, %arg2: i32) -> (i32, i32) {
    %c0_i32 = arith.constant 0 : i32
    %c0_i32_0 = arith.constant 0 : i32
    %c0_i32_1 = arith.constant 0 : i32
    return %c0_i32, %c0_i32_0 : i32, i32
  }
  func.func @transform_7(%arg0: i32, %arg1: i32, %arg2: i32) -> (i32, i32) {
    %c0_i32 = arith.constant 0 : i32
    %c0_i32_0 = arith.constant 0 : i32
    %c0_i32_1 = arith.constant 0 : i32
    return %c0_i32, %c0_i32_0 : i32, i32
  }
  func.func @transform_8(%arg0: i32, %arg1: i32, %arg2: i32) -> (i32, i32, i32) {
    %c0_i32 = arith.constant 0 : i32
    %c0_i32_0 = arith.constant 0 : i32
    return %arg0, %arg1, %c0_i32 : i32, i32, i32
  }
}

</mosaic_0001>

<llo_original>
// kernel: tpu_custom_call.1
$region0: #{tpu_custom_call.1}
  #allocation0 [shape = 'u32[]', space=smem, size = 0x4, offset = 0x4, fixed_abs, tag = 'smem constant byte address 0x4 - core index']
  #allocation1 [shape = 'u32[72,128]{1,0:T(1,128)}', space=vmem, size = 0x9000, scoped, tag = 'internal scratch']
  #allocation2 [shape = 'f32[8,128]{1,0:T(8,128)}', space=vmem, size = 0x1000, scoped, tag = 'scratch operand']
  #allocation3 [shape = 'f32[1,1]{1,0:T(1,128)S(6)}', space=smem, size = 0x200, scoped, tag = 'scoped memory for tpu_custom_call.1']
  %s0 = inlined_call_operand.vmem [shape: f32[2,8,4], index: 0, kind: input, shape index: {}]
  %s1 = inlined_call_operand.vmem [shape: f32[2,8,8], index: 1, kind: input, shape index: {}]
  %s2 = inlined_call_operand.vmem [shape: f32[2,8,1], index: 2, kind: input, shape index: {}]
  %s3 = inlined_call_operand.<no memory space> [shape: f32[1,1], index: 3, kind: input, shape index: {}]
  %s4 = inlined_call_operand.vmem [shape: f32[1,128], index: 4, kind: input, shape index: {}]
  %s5 = inlined_call_operand.vmem [shape: f32[4,128], index: 5, kind: input, shape index: {}]
  %s6 = inlined_call_operand.hbm [shape: f32[128,128], index: 6, kind: input, shape index: {}]
  %s7 = inlined_call_operand.vmem [shape: f32[1,128], index: 7, kind: input, shape index: {}]
  %s8 = inlined_call_operand.hbm [shape: f32[2,8,128], index: 8, kind: output, shape index: {}]
  %s9 = sld [smem:[#allocation0]]
  $region77: #{tpu_custom_call.1} parent=0
    _
  %s11 = ssub.s32 1, %s9
  %s12 = scalar_select 0, %s11, %s9
  %13 = sst [smem:[#allocation3]] %s3
  $region1: #{tpu_custom_call.1} parent=0
    #allocation4 [shape = 'u8[65536]{0}', space=vmem, size = 0x10000, scoped, tag = 'input window, operand 6, single buffered']
    #allocation5 [shape = 's32[2]{0}', space=sflag, size = 0x8, scoped, tag = 'scoped memory for tpu_custom_call.1']
    #allocation6 [shape = 's32[2]{0}', space=sflag, size = 0x8, scoped, tag = 'scoped memory for tpu_custom_call.1']
    #allocation7 [shape = 'u8[8192]{0}', space=vmem, size = 0x2000, scoped, tag = 'output window, operand 0']
    %14 = vsyncpa [#allocation5], 0
    %15 = vsyncpa [#allocation6], 0
    %s16 = scalar_lea.sflag [#allocation6], 1
    %17 = vsyncpa %s16, 0
    loop: start=0, step=1, limit=4
    $region2: #{tpu_custom_call.1} parent=1 // loop_pre_header
      _
    $region3: #{tpu_custom_call.1} parent=1 // loop_header
      %s19 = sphi 0, %s23
      %p20 = scmp.ge.s32.totalorder %s19, 4
      %s26 = sphi 0, %s45
      %s27 = sphi 0, %s41
      %s28 = sphi 0, %s37
      %s29 = sphi 0, %s26
      %s30 = sphi 0, %s27
      %s31 = sphi 0, %s28
      %s32 = sphi 0, %s29
      %s33 = sphi 0, %s30
      %s34 = sphi 0, %s31
      %s50 = sphi 0, %s52
      %s53 = sphi 0, %s50
      %s54 = sphi 0, %s53
      %s70 = sphi 0, %s54
      %s80 = sphi 0, %s82
      %s83 = sphi 0, %s80
      %s84 = sphi 0, %s83
      %s100 = sphi 0, %s84
      %s108 = sphi 0, %s110
      %s111 = sphi 0, %s108
      %s112 = sphi 0, %s111
      %s128 = sphi 0, %s112
      %s132 = sphi 0, %s132
      %s134 = sphi 0, %s132
      %s135 = sphi 0, %s134
      %s149 = sphi 0, %s135
      %s153 = sphi 0, %s153
      %s155 = sphi 0, %s153
      %s156 = sphi 0, %s155
      %s170 = sphi 0, %s156
      %s174 = sphi 0, %s174
      %s176 = sphi 0, %s174
      %s177 = sphi 0, %s176
      %s191 = sphi 0, %s177
      %s195 = sphi 0, %s195
      %s197 = sphi 0, %s195
      %s198 = sphi 0, %s197
      %s212 = sphi 0, %s198
      %s216 = sphi 0, %s216
      %s218 = sphi 0, %s216
      %s219 = sphi 0, %s218
      %s233 = sphi 0, %s219
      %s241 = sphi 0, %s243
      %s244 = sphi 0, %s241
      %s245 = sphi 0, %s244
      %s261 = sphi 0, %s245
    $region4: #{tpu_custom_call.1} parent=1 // loop_header_branch
      %22 = sbr.rel (%p20) target = $region8
    $region5: #{tpu_custom_call.1} parent=1 // loop_body
      %s24 = ssub.s32 %s19, 1
      %s25 = ssub.s32 %s19, 2
      %s35 = sadd.s32 1, %s28
      %p36 = scmp.ge.s32.totalorder %s35, 1
      %s37 = scalar_select %p36, 0, %s35
      %s38 = sadd.s32 1, %s27
      %s39 = scalar_select %p36, %s38, %s27
      %p40 = scmp.ge.s32.totalorder %s39, 1
      %s41 = scalar_select %p40, 0, %s39
      %s42 = sadd.s32 1, %s26
      %s43 = scalar_select %p40, %s42, %s26
      %p44 = scmp.ge.s32.totalorder %s43, 2
      %s45 = scalar_select %p44, 0, %s43
      %s46 = ssub.s32 %s26, %s45
      %s47 = ssub.s32 %s28, %s37
      %s48 = sor.u32 %s46, %s47
      %p49 = scmp.eq.s32.totalorder %s48, 0
      %s51 = sadd.s32 %s50, 1
      %s52 = scalar_select %p49, %s50, %s51
      %p55 = pneg %p49
      %p56 = scmp.eq.s32.totalorder %s19, 1
      %p57 = por %p55, %p56
      %p58 = scmp.ne.s32.totalorder %s50, %s53
      %p59 = scmp.eq.s32.totalorder %s19, 0
      %p60 = por %p58, %p59
      %p61 = scmp.ne.s32.totalorder %s50, %s53
      %p62 = scmp.eq.s32.totalorder %s24, 1
      %p63 = por %p61, %p62
      %p64 = scmp.ne.s32.totalorder %s53, %s54
      %p65 = scmp.eq.s32.totalorder %s24, 0
      %p66 = por %p64, %p65
      %p67 = scmp.ne.s32.totalorder %s53, %s54
      %p68 = scmp.eq.s32.totalorder %s25, 1
      %p69 = por %p67, %p68
      %p71 = scmp.ne.s32.totalorder %s54, %s70
      %p72 = scmp.eq.s32.totalorder %s25, 0
      %p73 = por %p71, %p72
      %s74 = ssub.s32 %s26, %s45
      %s75 = ssub.s32 %s28, %s37
      %s76 = sor.u32 %s74, %s75
      %s77 = ssub.s32 %s27, %s41
      %s78 = sor.u32 %s76, %s77
      %p79 = scmp.eq.s32.totalorder %s78, 0
      %s81 = sadd.s32 %s80, 1
      %s82 = scalar_select %p79, %s80, %s81
      %p85 = pneg %p79
      %p86 = scmp.eq.s32.totalorder %s19, 1
      %p87 = por %p85, %p86
      %p88 = scmp.ne.s32.totalorder %s80, %s83
      %p89 = scmp.eq.s32.totalorder %s19, 0
      %p90 = por %p88, %p89
      %p91 = scmp.ne.s32.totalorder %s80, %s83
      %p92 = scmp.eq.s32.totalorder %s24, 1
      %p93 = por %p91, %p92
      %p94 = scmp.ne.s32.totalorder %s83, %s84
      %p95 = scmp.eq.s32.totalorder %s24, 0
      %p96 = por %p94, %p95
      %p97 = scmp.ne.s32.totalorder %s83, %s84
      %p98 = scmp.eq.s32.totalorder %s25, 1
      %p99 = por %p97, %p98
      %p101 = scmp.ne.s32.totalorder %s84, %s100
      %p102 = scmp.eq.s32.totalorder %s25, 0
      %p103 = por %p101, %p102
      %s104 = ssub.s32 %s26, %s45
      %s105 = ssub.s32 %s27, %s41
      %s106 = sor.u32 %s104, %s105
      %p107 = scmp.eq.s32.totalorder %s106, 0
      %s109 = sadd.s32 %s108, 1
      %s110 = scalar_select %p107, %s108, %s109
      %p113 = pneg %p107
      %p114 = scmp.eq.s32.totalorder %s19, 1
      %p115 = por %p113, %p114
      %p116 = scmp.ne.s32.totalorder %s108, %s111
      %p117 = scmp.eq.s32.totalorder %s19, 0
      %p118 = por %p116, %p117
      %p119 = scmp.ne.s32.totalorder %s108, %s111
      %p120 = scmp.eq.s32.totalorder %s24, 1
      %p121 = por %p119, %p120
      %p122 = scmp.ne.s32.totalorder %s111, %s112
      %p123 = scmp.eq.s32.totalorder %s24, 0
      %p124 = por %p122, %p123
      %p125 = scmp.ne.s32.totalorder %s111, %s112
      %p126 = scmp.eq.s32.totalorder %s25, 1
      %p127 = por %p125, %p126
      %p129 = scmp.ne.s32.totalorder %s112, %s128
      %p130 = scmp.eq.s32.totalorder %s25, 0
      %p131 = por %p129, %p130
      %s133 = sadd.s32 %s132, 1
      %p136 = scmp.eq.s32.totalorder %s19, 1
      %p137 = scmp.ne.s32.totalorder %s132, %s134
      %p138 = scmp.eq.s32.totalorder %s19, 0
      %p139 = por %p137, %p138
      %p140 = scmp.ne.s32.totalorder %s132, %s134
      %p141 = scmp.eq.s32.totalorder %s24, 1
      %p142 = por %p140, %p141
      %p143 = scmp.ne.s32.totalorder %s134, %s135
      %p144 = scmp.eq.s32.totalorder %s24, 0
      %p145 = por %p143, %p144
      %p146 = scmp.ne.s32.totalorder %s134, %s135
      %p147 = scmp.eq.s32.totalorder %s25, 1
      %p148 = por %p146, %p147
      %p150 = scmp.ne.s32.totalorder %s135, %s149
      %p151 = scmp.eq.s32.totalorder %s25, 0
      %p152 = por %p150, %p151
      %s154 = sadd.s32 %s153, 1
      %p157 = scmp.eq.s32.totalorder %s19, 1
      %p158 = scmp.ne.s32.totalorder %s153, %s155
      %p159 = scmp.eq.s32.totalorder %s19, 0
      %p160 = por %p158, %p159
      %p161 = scmp.ne.s32.totalorder %s153, %s155
      %p162 = scmp.eq.s32.totalorder %s24, 1
      %p163 = por %p161, %p162
      %p164 = scmp.ne.s32.totalorder %s155, %s156
      %p165 = scmp.eq.s32.totalorder %s24, 0
      %p166 = por %p164, %p165
      %p167 = scmp.ne.s32.totalorder %s155, %s156
      %p168 = scmp.eq.s32.totalorder %s25, 1
      %p169 = por %p167, %p168
      %p171 = scmp.ne.s32.totalorder %s156, %s170
      %p172 = scmp.eq.s32.totalorder %s25, 0
      %p173 = por %p171, %p172
      %s175 = sadd.s32 %s174, 1
      %p178 = scmp.eq.s32.totalorder %s19, 1
      %p179 = scmp.ne.s32.totalorder %s174, %s176
      %p180 = scmp.eq.s32.totalorder %s19, 0
      %p181 = por %p179, %p180
      %p182 = scmp.ne.s32.totalorder %s174, %s176
      %p183 = scmp.eq.s32.totalorder %s24, 1
      %p184 = por %p182, %p183
      %p185 = scmp.ne.s32.totalorder %s176, %s177
      %p186 = scmp.eq.s32.totalorder %s24, 0
      %p187 = por %p185, %p186
      %p188 = scmp.ne.s32.totalorder %s176, %s177
      %p189 = scmp.eq.s32.totalorder %s25, 1
      %p190 = por %p188, %p189
      %p192 = scmp.ne.s32.totalorder %s177, %s191
      %p193 = scmp.eq.s32.totalorder %s25, 0
      %p194 = por %p192, %p193
      %s196 = sadd.s32 %s195, 1
      %p199 = scmp.eq.s32.totalorder %s19, 1
      %p200 = scmp.ne.s32.totalorder %s195, %s197
      %p201 = scmp.eq.s32.totalorder %s19, 0
      %p202 = por %p200, %p201
      %p203 = scmp.ne.s32.totalorder %s195, %s197
      %p204 = scmp.eq.s32.totalorder %s24, 1
      %p205 = por %p203, %p204
      %p206 = scmp.ne.s32.totalorder %s197, %s198
      %p207 = scmp.eq.s32.totalorder %s24, 0
      %p208 = por %p206, %p207
      %p209 = scmp.ne.s32.totalorder %s197, %s198
      %p210 = scmp.eq.s32.totalorder %s25, 1
      %p211 = por %p209, %p210
      %p213 = scmp.ne.s32.totalorder %s198, %s212
      %p214 = scmp.eq.s32.totalorder %s25, 0
      %p215 = por %p213, %p214
      %s217 = sadd.s32 %s216, 1
      %p220 = scmp.eq.s32.totalorder %s19, 1
      %p221 = scmp.ne.s32.totalorder %s216, %s218
      %p222 = scmp.eq.s32.totalorder %s19, 0
      %p223 = por %p221, %p222
      %p224 = scmp.ne.s32.totalorder %s216, %s218
      %p225 = scmp.eq.s32.totalorder %s24, 1
      %p226 = por %p224, %p225
      %p227 = scmp.ne.s32.totalorder %s218, %s219
      %p228 = scmp.eq.s32.totalorder %s24, 0
      %p229 = por %p227, %p228
      %p230 = scmp.ne.s32.totalorder %s218, %s219
      %p231 = scmp.eq.s32.totalorder %s25, 1
      %p232 = por %p230, %p231
      %p234 = scmp.ne.s32.totalorder %s219, %s233
      %p235 = scmp.eq.s32.totalorder %s25, 0
      %p236 = por %p234, %p235
      %s237 = ssub.s32 %s26, %s45
      %s238 = ssub.s32 %s27, %s41
      %s239 = sor.u32 %s237, %s238
      %p240 = scmp.eq.s32.totalorder %s239, 0
      %s242 = sadd.s32 %s241, 1
      %s243 = scalar_select %p240, %s241, %s242
      %p246 = pneg %p240
      %p247 = scmp.eq.s32.totalorder %s19, 1
      %p248 = por %p246, %p247
      %p249 = scmp.ne.s32.totalorder %s241, %s244
      %p250 = scmp.eq.s32.totalorder %s19, 0
      %p251 = por %p249, %p250
      %p252 = scmp.ne.s32.totalorder %s241, %s244
      %p253 = scmp.eq.s32.totalorder %s24, 1
      %p254 = por %p252, %p253
      %p255 = scmp.ne.s32.totalorder %s244, %s245
      %p256 = scmp.eq.s32.totalorder %s24, 0
      %p257 = por %p255, %p256
      %p258 = scmp.ne.s32.totalorder %s244, %s245
      %p259 = scmp.eq.s32.totalorder %s25, 1
      %p260 = por %p258, %p259
      %p262 = scmp.ne.s32.totalorder %s245, %s261
      %p263 = scmp.eq.s32.totalorder %s25, 0
      %p264 = por %p262, %p263
      %p265 = scmp.le.s32.totalorder 1, %s19
      %p266 = scmp.lt.s32.totalorder %s19, 3
      %p267 = pnand %p265, %p266
      %p268 = pneg %p267
      // Predicated region
      $region9: #{tpu_custom_call.1} parent=5 // pred_check
        _
      $region10: #{tpu_custom_call.1} parent=5 // pred_check_branch
        %270 = sbr.rel (%p267) target = $region12
      $region11: #{tpu_custom_call.1} parent=5 // pred_region
        %s271 = ssub.s32 %s19, 1
        // Predicated region
        $region13: #{tpu_custom_call.1} parent=11 // pred_check
          %p272 = pneg %p145
        $region14: #{tpu_custom_call.1} parent=11 // pred_check_branch
          %274 = sbr.rel (%p272) target = $region16
        $region15: #{tpu_custom_call.1} parent=11 // pred_region
          _
        $region16: #{tpu_custom_call.1} parent=11 // pred_fallthru
          _
        // Predicated region
        $region17: #{tpu_custom_call.1} parent=11 // pred_check
          %p275 = pneg %p166
        $region18: #{tpu_custom_call.1} parent=11 // pred_check_branch
          %277 = sbr.rel (%p275) target = $region20
        $region19: #{tpu_custom_call.1} parent=11 // pred_region
          _
        $region20: #{tpu_custom_call.1} parent=11 // pred_fallthru
          _
        // Predicated region
        $region21: #{tpu_custom_call.1} parent=11 // pred_check
          %p278 = pneg %p187
        $region22: #{tpu_custom_call.1} parent=11 // pred_check_branch
          %280 = sbr.rel (%p278) target = $region24
        $region23: #{tpu_custom_call.1} parent=11 // pred_region
          _
        $region24: #{tpu_custom_call.1} parent=11 // pred_fallthru
          _
        // Predicated region
        $region25: #{tpu_custom_call.1} parent=11 // pred_check
          %p281 = pneg %p208
        $region26: #{tpu_custom_call.1} parent=11 // pred_check_branch
          %283 = sbr.rel (%p281) target = $region28
        $region27: #{tpu_custom_call.1} parent=11 // pred_region
          %285 = vsyncadd [#allocation5], 0
          %s286 = sshll.u32 %s6, 4
          %s287 = int_to_ptr.hbm [resolvable:$true] %s286
          %s288 = sshll.u32 [#allocation4], 4
          %s289 = int_to_ptr.vmem [resolvable:$true] %s288
          %294 = dma.hbm_to_vmem [thread:$0]  %s287, 2048, %s289, [#allocation5], 128, 128, 8
        $region28: #{tpu_custom_call.1} parent=11 // pred_fallthru
          _
        // Predicated region
        $region29: #{tpu_custom_call.1} parent=11 // pred_check
          %p295 = pneg %p229
        $region30: #{tpu_custom_call.1} parent=11 // pred_check_branch
          %297 = sbr.rel (%p295) target = $region32
        $region31: #{tpu_custom_call.1} parent=11 // pred_region
          _
        $region32: #{tpu_custom_call.1} parent=11 // pred_fallthru
          _
      $region12: #{tpu_custom_call.1} parent=5 // pred_fallthru
        _
      %p298 = scmp.lt.s32.totalorder %s19, 2
      // Predicated region
      $region33: #{tpu_custom_call.1} parent=5 // pred_check
        %p299 = pneg %p298
      $region34: #{tpu_custom_call.1} parent=5 // pred_check_branch
        %301 = sbr.rel (%p299) target = $region36
      $region35: #{tpu_custom_call.1} parent=5 // pred_region
        // Predicated region
        $region37: #{tpu_custom_call.1} parent=35 // pred_check
          %p302 = pneg %p60
        $region38: #{tpu_custom_call.1} parent=35 // pred_check_branch
          %304 = sbr.rel (%p302) target = $region40
        $region39: #{tpu_custom_call.1} parent=35 // pred_region
          %p305 = scmp.lt.s32.totalorder %s26, 1
          %s306 = scalar_select %p305, %s26, 1
          %p307 = scmp.lt.s32.totalorder %s28, 0
          %s308 = scalar_select %p307, %s28, 0
          %s309 = sadd.s32 %s308, %s306
          %s310 = smul.addr %s309, 8
          %s311 = scalar_lea.vmem %s0, %s310
        $region40: #{tpu_custom_call.1} parent=35 // pred_fallthru
          _
        // Predicated region
        $region41: #{tpu_custom_call.1} parent=35 // pred_check
          %p312 = pneg %p90
        $region42: #{tpu_custom_call.1} parent=35 // pred_check_branch
          %314 = sbr.rel (%p312) target = $region44
        $region43: #{tpu_custom_call.1} parent=35 // pred_region
          %p315 = scmp.lt.s32.totalorder %s26, 1
          %s316 = scalar_select %p315, %s26, 1
          %p317 = scmp.lt.s32.totalorder %s28, 0
          %s318 = scalar_select %p317, %s28, 0
          %p319 = scmp.lt.s32.totalorder %s27, 0
          %s320 = scalar_select %p319, %s27, 0
          %s321 = sadd.s32 %s320, %s318
          %s322 = sadd.s32 %s321, %s316
          %s323 = smul.addr %s322, 8
          %s324 = scalar_lea.vmem %s1, %s323
        $region44: #{tpu_custom_call.1} parent=35 // pred_fallthru
          _
        // Predicated region
        $region45: #{tpu_custom_call.1} parent=35 // pred_check
          %p325 = pneg %p118
        $region46: #{tpu_custom_call.1} parent=35 // pred_check_branch
          %327 = sbr.rel (%p325) target = $region48
        $region47: #{tpu_custom_call.1} parent=35 // pred_region
          %p328 = scmp.lt.s32.totalorder %s26, 1
          %s329 = scalar_select %p328, %s26, 1
          %p330 = scmp.lt.s32.totalorder %s27, 0
          %s331 = scalar_select %p330, %s27, 0
          %s332 = sadd.s32 %s331, %s329
          %s333 = smul.addr %s332, 8
          %s334 = scalar_lea.vmem %s2, %s333
        $region48: #{tpu_custom_call.1} parent=35 // pred_fallthru
          _
      $region36: #{tpu_custom_call.1} parent=5 // pred_fallthru
        _
      %p335 = scmp.le.s32.totalorder 1, %s19
      %p336 = scmp.lt.s32.totalorder %s19, 3
      %p337 = pnand %p335, %p336
      %p338 = pneg %p337
      // Predicated region
      $region49: #{tpu_custom_call.1} parent=5 // pred_check
        _
      $region50: #{tpu_custom_call.1} parent=5 // pred_check_branch
        %340 = sbr.rel (%p337) target = $region52
      $region51: #{tpu_custom_call.1} parent=5 // pred_region
        %s341 = ssub.s32 %s19, 1
        // Predicated region
        $region53: #{tpu_custom_call.1} parent=51 // pred_check
          %p342 = pneg %p208
        $region54: #{tpu_custom_call.1} parent=51 // pred_check_branch
          %344 = sbr.rel (%p342) target = $region56
        $region55: #{tpu_custom_call.1} parent=51 // pred_region
          %346 = dma.done [#allocation5], 2048
        $region56: #{tpu_custom_call.1} parent=51 // pred_fallthru
          _
        %p347 = scmp.lt.s32.totalorder %s29, 1
        %s348 = scalar_select %p347, %s29, 1
        %p349 = scmp.lt.s32.totalorder %s31, 0
        %s350 = scalar_select %p349, %s31, 0
        %s351 = sadd.s32 %s350, %s348
        %s352 = smul.addr %s351, 8
        %s353 = scalar_lea.vmem %s0, %s352
        %p354 = pneg %p66
        %p355 = pneg %p63
        %p356 = scmp.lt.s32.totalorder %s29, 1
        %s357 = scalar_select %p356, %s29, 1
        %p358 = scmp.lt.s32.totalorder %s31, 0
        %s359 = scalar_select %p358, %s31, 0
        %p360 = scmp.lt.s32.totalorder %s30, 0
        %s361 = scalar_select %p360, %s30, 0
        %s362 = sadd.s32 %s361, %s359
        %s363 = sadd.s32 %s362, %s357
        %s364 = smul.addr %s363, 8
        %s365 = scalar_lea.vmem %s1, %s364
        %p366 = pneg %p96
        %p367 = pneg %p93
        %p368 = scmp.lt.s32.totalorder %s29, 1
        %s369 = scalar_select %p368, %s29, 1
        %p370 = scmp.lt.s32.totalorder %s30, 0
        %s371 = scalar_select %p370, %s30, 0
        %s372 = sadd.s32 %s371, %s369
        %s373 = smul.addr %s372, 8
        %s374 = scalar_lea.vmem %s2, %s373
        %p375 = pneg %p124
        %p376 = pneg %p121
        %p377 = pneg %p145
        %p378 = pneg %p142
        %p379 = pneg %p166
        %p380 = pneg %p163
        %p381 = pneg %p187
        %p382 = pneg %p184
        %p383 = pneg %p208
        %p384 = pneg %p205
        %p385 = pneg %p229
        %p386 = pneg %p226
        %p387 = pneg %p257
        %p388 = pneg %p254
        %s389 = sand.u32 %s244, 1
        %s390 = scalar_lea.sflag [#allocation6], %s389
        %s391 = sand.u32 %s244, 1
        %s392 = smul.addr %s391, 8
        %s393 = scalar_lea.vmem [#allocation7], %s392
        %p394 = scmp.lt.s32.totalorder %s29, 1
        %s395 = scalar_select %p394, %s29, 1
        %p396 = scmp.lt.s32.totalorder %s31, 0
        %s397 = scalar_select %p396, %s31, 0
        %s398 = sadd.s32 %s397, %s395
        %s399 = smul.addr %s398, 8
        %s400 = scalar_lea.vmem %s0, %s399
        %p401 = scmp.lt.s32.totalorder %s29, 1
        %s402 = scalar_select %p401, %s29, 1
        %p403 = scmp.lt.s32.totalorder %s31, 0
        %s404 = scalar_select %p403, %s31, 0
        %p405 = scmp.lt.s32.totalorder %s30, 0
        %s406 = scalar_select %p405, %s30, 0
        %s407 = sadd.s32 %s406, %s404
        %s408 = sadd.s32 %s407, %s402
        %s409 = smul.addr %s408, 8
        %s410 = scalar_lea.vmem %s1, %s409
        %p411 = scmp.lt.s32.totalorder %s29, 1
        %s412 = scalar_select %p411, %s29, 1
        %p413 = scmp.lt.s32.totalorder %s30, 0
        %s414 = scalar_select %p413, %s30, 0
        %s415 = sadd.s32 %s414, %s412
        %s416 = smul.addr %s415, 8
        %s417 = scalar_lea.vmem %s2, %s416
        %p418 = scmp.eq.s32.totalorder %s31, 0
        // Predicated region
        $region57: #{tpu_custom_call.1} parent=51 // pred_check
          %p419 = pneg %p418
        $region58: #{tpu_custom_call.1} parent=51 // pred_check_branch
          %421 = sbr.rel (%p419) target = $region60
        $region59: #{tpu_custom_call.1} parent=51 // pred_region
          %422 = vst [vmem:[#allocation2] sm:$0xff] 0.0
        $region60: #{tpu_custom_call.1} parent=51 // pred_fallthru
          _
        %v423 = vld [vmem:[%s400] sm:$0xff]
        %v424 = vld [vmem:[%s410] sm:$0xff]
        %v425 = vld [vmem:[%s5] sm:$0xf]
        %vm426 = vcmask 31744
        %v428 = vsel %vm426, %v423, 0
        %vm430 = vcmask 1043456
        %v432 = vsel %vm430, %v425, 0
        %434 = vmatpush.msra.mxu0 0.0
        %435 = vmatpush.msra.mxu0 0.0
        %436 = vmatpush.msra.mxu0 0.0
        %437 = vmatpush.msra.mxu0 0.0
        %438 = vmatpush.msra.mxu0 0.0
        %439 = vmatpush.msra.mxu0 0.0
        %440 = vmatpush.msra.mxu0 0.0
        %441 = vmatpush.msra.mxu0 0.0
        %442 = vmatpush.msra.mxu0 0.0
        %443 = vmatpush.msra.mxu0 0.0
        %444 = vmatpush.msra.mxu0 0.0
        %445 = vmatpush.msra.mxu0 0.0
        %446 = vmatpush.msra.mxu0 0.0
        %447 = vmatpush.msra.mxu0 0.0
        %448 = vmatpush.msra.mxu0 0.0
        %449 = vmatpush.msra.mxu0 %v432
        %450 = vmatmul.f32.gmra.mxu0 %v428
        %v451 = vpop.f32.mrf.mxu0
        %v452 = vadd.f32 0.0, %v451
        %453 = vdwg.mxu0
        %vm454 = vcmp.eq.f32.partialorder %v424, 0.0
        %v455 = vsel %vm454, -1e+30, 0.0
        %v456 = vld [vmem:[%s4] sm:$0x1]
        %v457 = vperm.slane %v424, 0
        %v458 = vlaneseq
        %v459 = vshrl.u32 %v458, 7
        %461 = vset.pattern.permute.xlu0 %v459
        %462 = vperm.xlu0 %461, %v457
        %v463 = vpop.permute.xlu0 %462
        %v464 = vperm.slane %v424, 1
        %v465 = vlaneseq
        %v466 = vshrl.u32 %v465, 7
        %468 = vset.pattern.permute.xlu0 %v466
        %469 = vperm.xlu0 %468, %v464
        %v470 = vpop.permute.xlu0 %469
        %v471 = vperm.slane %v424, 2
        %v472 = vlaneseq
        %v473 = vshrl.u32 %v472, 7
        %475 = vset.pattern.permute.xlu0 %v473
        %476 = vperm.xlu0 %475, %v471
        %v477 = vpop.permute.xlu0 %476
        %v478 = vperm.slane %v424, 3
        %v479 = vlaneseq
        %v480 = vshrl.u32 %v479, 7
        %482 = vset.pattern.permute.xlu0 %v480
        %483 = vperm.xlu0 %482, %v478
        %v484 = vpop.permute.xlu0 %483
        %v485 = vperm.slane %v424, 4
        %v486 = vlaneseq
        %v487 = vshrl.u32 %v486, 7
        %489 = vset.pattern.permute.xlu0 %v487
        %490 = vperm.xlu0 %489, %v485
        %v491 = vpop.permute.xlu0 %490
        %v492 = vperm.slane %v424, 5
        %v493 = vlaneseq
        %v494 = vshrl.u32 %v493, 7
        %496 = vset.pattern.permute.xlu0 %v494
        %497 = vperm.xlu0 %496, %v492
        %v498 = vpop.permute.xlu0 %497
        %v499 = vperm.slane %v424, 6
        %v500 = vlaneseq
        %v501 = vshrl.u32 %v500, 7
        %503 = vset.pattern.permute.xlu0 %v501
        %504 = vperm.xlu0 %503, %v499
        %v505 = vpop.permute.xlu0 %504
        %v506 = vperm.slane %v424, 7
        %v507 = vlaneseq
        %v508 = vshrl.u32 %v507, 7
        %510 = vset.pattern.permute.xlu0 %v508
        %511 = vperm.xlu0 %510, %v506
        %v512 = vpop.permute.xlu0 %511
        %v514 = vperm.slane %v456, 0
        %v516 = vmul.f32 %v463, %v514
        %v517 = vmul.f32 %v470, %v514
        %v518 = vmul.f32 %v477, %v514
        %v519 = vmul.f32 %v484, %v514
        %v520 = vmul.f32 %v491, %v514
        %v521 = vmul.f32 %v498, %v514
        %v522 = vmul.f32 %v505, %v514
        %v523 = vmul.f32 %v512, %v514
        %v525 = vrot.slane %v452, 1
        %v526 = vrot.slane %v452, 2
        %v527 = vrot.slane %v452, 3
        %v528 = vrot.slane %v452, 4
        %v529 = vrot.slane %v452, 5
        %v530 = vrot.slane %v452, 6
        %v531 = vrot.slane %v452, 7
        %v532 = vperm.slane %v452, 0
        %v533 = vperm.slane %v525, 0
        %v534 = vperm.slane %v526, 0
        %v535 = vperm.slane %v527, 0
        %v536 = vperm.slane %v528, 0
        %v537 = vperm.slane %v529, 0
        %v538 = vperm.slane %v530, 0
        %v539 = vperm.slane %v531, 0
        %v548 = vadd.f32 %v516, %v532
        %v549 = vadd.f32 %v517, %v533
        %v550 = vadd.f32 %v518, %v534
        %v551 = vadd.f32 %v519, %v535
        %v552 = vadd.f32 %v520, %v536
        %v553 = vadd.f32 %v521, %v537
        %v554 = vadd.f32 %v522, %v538
        %v555 = vadd.f32 %v523, %v539
        %v556 = vperm.slane %v455, 0
        %v557 = vlaneseq
        %v558 = vshrl.u32 %v557, 7
        %560 = vset.pattern.permute.xlu0 %v558
        %561 = vperm.xlu0 %560, %v556
        %v562 = vpop.permute.xlu0 %561
        %v563 = vperm.slane %v455, 1
        %v564 = vlaneseq
        %v565 = vshrl.u32 %v564, 7
        %567 = vset.pattern.permute.xlu0 %v565
        %568 = vperm.xlu0 %567, %v563
        %v569 = vpop.permute.xlu0 %568
        %v570 = vperm.slane %v455, 2
        %v571 = vlaneseq
        %v572 = vshrl.u32 %v571, 7
        %574 = vset.pattern.permute.xlu0 %v572
        %575 = vperm.xlu0 %574, %v570
        %v576 = vpop.permute.xlu0 %575
        %v577 = vperm.slane %v455, 3
        %v578 = vlaneseq
        %v579 = vshrl.u32 %v578, 7
        %581 = vset.pattern.permute.xlu0 %v579
        %582 = vperm.xlu0 %581, %v577
        %v583 = vpop.permute.xlu0 %582
        %v584 = vperm.slane %v455, 4
        %v585 = vlaneseq
        %v586 = vshrl.u32 %v585, 7
        %588 = vset.pattern.permute.xlu0 %v586
        %589 = vperm.xlu0 %588, %v584
        %v590 = vpop.permute.xlu0 %589
        %v591 = vperm.slane %v455, 5
        %v592 = vlaneseq
        %v593 = vshrl.u32 %v592, 7
        %595 = vset.pattern.permute.xlu0 %v593
        %596 = vperm.xlu0 %595, %v591
        %v597 = vpop.permute.xlu0 %596
        %v598 = vperm.slane %v455, 6
        %v599 = vlaneseq
        %v600 = vshrl.u32 %v599, 7
        %602 = vset.pattern.permute.xlu0 %v600
        %603 = vperm.xlu0 %602, %v598
        %v604 = vpop.permute.xlu0 %603
        %v605 = vperm.slane %v455, 7
        %v606 = vlaneseq
        %v607 = vshrl.u32 %v606, 7
        %609 = vset.pattern.permute.xlu0 %v607
        %610 = vperm.xlu0 %609, %v605
        %v611 = vpop.permute.xlu0 %610
        %v612 = vadd.f32 %v548, %v562
        %v613 = vadd.f32 %v549, %v569
        %v614 = vadd.f32 %v550, %v576
        %v615 = vadd.f32 %v551, %v583
        %v616 = vadd.f32 %v552, %v590
        %v617 = vadd.f32 %v553, %v597
        %v618 = vadd.f32 %v554, %v604
        %v619 = vadd.f32 %v555, %v611
        %v620 = vmax.f32 %v612, 0.0
        %v621 = vmax.f32 %v613, 0.0
        %v622 = vmax.f32 %v614, 0.0
        %v623 = vmax.f32 %v615, 0.0
        %v624 = vmax.f32 %v616, 0.0
        %v625 = vmax.f32 %v617, 0.0
        %v626 = vmax.f32 %v618, 0.0
        %v627 = vmax.f32 %v619, 0.0
        %v628 = vld [vmem:[#allocation2] sm:$0xff]
        %v629 = vadd.f32 %v620, %v621
        %v630 = vadd.f32 %v629, %v622
        %v631 = vadd.f32 %v630, %v623
        %v632 = vadd.f32 %v631, %v624
        %v633 = vadd.f32 %v632, %v625
        %v634 = vadd.f32 %v633, %v626
        %v635 = vadd.f32 %v634, %v627
        %v636 = vadd.f32 %v628, %v635
        %637 = vst [vmem:[#allocation2] sm:$0xff] %v636
        // Predicated region
        $region61: #{tpu_custom_call.1} parent=51 // pred_check
          %p638 = pneg %p418
        $region62: #{tpu_custom_call.1} parent=51 // pred_check_branch
          %640 = sbr.rel (%p638) target = $region64
        $region63: #{tpu_custom_call.1} parent=51 // pred_region
          %v641 = vld [vmem:[%s417] sm:$0xff]
          %v642 = vrcp.pop %v641
          %v643 = vmul.f32 %v641, %v642
          %v644 = vsub.f32 1.0, %v643
          %v645 = vmul.f32 %v642, %v644
          %v646 = vadd.f32 %v642, %v645
          %vm647 = vweird.f32 %v641
          %vm648 = vweird.f32 %v642
          %vm649 = vmor %vm647, %vm648
          %v650 = vsel %vm649, %v642, %v646
          %v651 = vand.u32 2147483647, %v641
          %vm652 = vcmp.eq.f32.partialorder %v651, 8.507059e+37
          %v653 = vand.u32 %v641, 2147483648
          %v654 = vor.u32 1.1754944e-38, %v653
          %v655 = vsel %vm652, %v654, %v650
          %v656 = vld [vmem:[#allocation2] sm:$0xff]
          %658 = vset.pattern.permute.xlu0 0
          %659 = vperm.xlu0 %658, %v655
          %v660 = vpop.permute.xlu0 %659
          %v662 = vmul.f32 %v656, %v660
          %s663 = sld [smem:[#allocation3]]
          %v664 = vstv %s663
          %v665 = vmul.f32 %v641, %v664
          %v666 = vld [vmem:[#allocation4] sm:$0xff]
          %v667 = vld [vmem:[#allocation4 + $0x8] sm:$0xff]
          %v668 = vld [vmem:[#allocation4 + $0x10] sm:$0xff]
          %v669 = vld [vmem:[#allocation4 + $0x18] sm:$0xff]
          %v670 = vld [vmem:[#allocation4 + $0x20] sm:$0xff]
          %v671 = vld [vmem:[#allocation4 + $0x28] sm:$0xff]
          %v672 = vld [vmem:[#allocation4 + $0x30] sm:$0xff]
          %v673 = vld [vmem:[#allocation4 + $0x38] sm:$0xff]
          %v674 = vld [vmem:[#allocation4 + $0x40] sm:$0xff]
          %v675 = vld [vmem:[#allocation4 + $0x48] sm:$0xff]
          %v676 = vld [vmem:[#allocation4 + $0x50] sm:$0xff]
          %v677 = vld [vmem:[#allocation4 + $0x58] sm:$0xff]
          %v678 = vld [vmem:[#allocation4 + $0x60] sm:$0xff]
          %v679 = vld [vmem:[#allocation4 + $0x68] sm:$0xff]
          %v680 = vld [vmem:[#allocation4 + $0x70] sm:$0xff]
          %v681 = vld [vmem:[#allocation4 + $0x78] sm:$0xff]
          %v682 = vld [vmem:[%s7] sm:$0x1]
          %684 = vset.pattern.permute.xlu0 0
          %685 = vperm.xlu0 %684, %v665
          %v686 = vpop.permute.xlu0 %685
          %v689 = vperm.slane %v682, 0
          %v691 = vmul.f32 %v686, %v689
          %692 = vmatpush.msra.mxu0 %v681
          %693 = vmatpush.msra.mxu0 %v680
          %694 = vmatpush.msra.mxu0 %v679
          %695 = vmatpush.msra.mxu0 %v678
          %696 = vmatpush.msra.mxu0 %v677
          %697 = vmatpush.msra.mxu0 %v676
          %698 = vmatpush.msra.mxu0 %v675
          %699 = vmatpush.msra.mxu0 %v674
          %700 = vmatpush.msra.mxu0 %v673
          %701 = vmatpush.msra.mxu0 %v672
          %702 = vmatpush.msra.mxu0 %v671
          %703 = vmatpush.msra.mxu0 %v670
          %704 = vmatpush.msra.mxu0 %v669
          %705 = vmatpush.msra.mxu0 %v668
          %706 = vmatpush.msra.mxu0 %v667
          %707 = vmatpush.msra.mxu0 %v666
          %708 = vmatmul.f32.gmra.mxu0 %v662
          %v709 = vpop.f32.mrf.mxu0
          %v710 = vadd.f32 %v691, %v709
          %711 = vdwg.mxu0
          %v712 = vmax.f32 %v710, 0.0
          %713 = vst [vmem:[%s393] sm:$0xff] %v712
        $region64: #{tpu_custom_call.1} parent=51 // pred_fallthru
          _
        %s714 = sand.u32 %s244, 1
        %s715 = scalar_lea.sflag [#allocation6], %s714
        %s716 = sand.u32 %s244, 1
        %s717 = smul.addr %s716, 8
        %s718 = scalar_lea.vmem [#allocation7], %s717
        // Predicated region
        $region65: #{tpu_custom_call.1} parent=51 // pred_check
          %p719 = pneg %p254
        $region66: #{tpu_custom_call.1} parent=51 // pred_check_branch
          %721 = sbr.rel (%p719) target = $region68
        $region67: #{tpu_custom_call.1} parent=51 // pred_region
          %723 = vsyncadd %s715, 0
          %s724 = sadd.s32 %s30, %s29
          %s725 = smul.addr %s724, 8
          %s726 = scalar_lea.hbm %s8, %s725
          %s728 = sshll.u32 %s718, 4
          %s729 = int_to_ptr.vmem [resolvable:$true] %s728
          %s730 = sshll.u32 %s726, 4
          %s731 = int_to_ptr.hbm [resolvable:$true] %s730
          %733 = dma.vmem_to_hbm [thread:$0]  %s729, 128, %s731, %s715
        $region68: #{tpu_custom_call.1} parent=51 // pred_fallthru
          _
      $region52: #{tpu_custom_call.1} parent=5 // pred_fallthru
        _
      %p734 = scmp.le.s32.totalorder 2, %s19
      // Predicated region
      $region69: #{tpu_custom_call.1} parent=5 // pred_check
        %p735 = pneg %p734
      $region70: #{tpu_custom_call.1} parent=5 // pred_check_branch
        %737 = sbr.rel (%p735) target = $region72
      $region71: #{tpu_custom_call.1} parent=5 // pred_region
        %s738 = ssub.s32 %s19, 2
        // Predicated region
        $region73: #{tpu_custom_call.1} parent=71 // pred_check
          %p739 = pneg %p260
        $region74: #{tpu_custom_call.1} parent=71 // pred_check_branch
          %741 = sbr.rel (%p739) target = $region76
        $region75: #{tpu_custom_call.1} parent=71 // pred_region
          %s742 = sand.u32 %s245, 1
          %s743 = scalar_lea.sflag [#allocation6], %s742
          %s744 = sand.u32 %s245, 1
          %s745 = smul.addr %s744, 8
          %s746 = scalar_lea.vmem [#allocation7], %s745
          %748 = dma.done %s743, 128
        $region76: #{tpu_custom_call.1} parent=71 // pred_fallthru
          _
      $region72: #{tpu_custom_call.1} parent=5 // pred_fallthru
        _
    $region6: #{tpu_custom_call.1} parent=1 // loop_footer
      %s23 = sadd.s32 1, %s19
    $region7: #{tpu_custom_call.1} parent=1 // loop_footer_branch
      %18 = sbr.rel target = $region3
    $region8: #{tpu_custom_call.1} parent=1 // loop_exit
      _
    %749 = vsyncpa [#allocation5], 1
    %s750 = scalar_lea.sflag [#allocation5], 1
    %751 = vsyncpa %s750, 1
    %752 = vsyncpa [#allocation6], 1
    %s753 = scalar_lea.sflag [#allocation6], 1
    %754 = vsyncpa %s753, 1

</llo_original>
